<compile_context>
chip_gen: v7x
topology: tpu7x:2x2x1
jax: 0.10.0
libtpu: 0.0.40
codegen_flags: <defaults>
</compile_context>

<pallas_src>
import functools

import jax
import jax.numpy as jnp
from jax.experimental import pallas as pl
from jax.experimental.pallas import tpu as pltpu

IN_DIM = 28 * 28          # 784 (full feature dim -> legal lane block as-is)
HID = 256
OUT_DIM = 10
OUT_PAD = 128             # lane-dense padded output width
N_STEPS = 4
MAX_TB = 512              # batch tile cap (VMEM footprint ~7 MiB incl. buffers)


def _cdiv(a, b):
    return (a + b - 1) // b


def _round_up(n, m):
    return ((n + m - 1) // m) * m


def _choose_tb(B, max_tb=MAX_TB):
    """Batch tile: minimal padding, >=2 grid steps for larger batches (v7x
    dual-TC sharding), up to max_tb rows to amortize per-step overhead."""
    n_tiles = _cdiv(B, max_tb)
    if B >= 256:                      # enough rows that a 2-way split pays off
        n_tiles = max(n_tiles, 2)
    return _round_up(_cdiv(B, n_tiles), 8)


def denseddnet_kernel(x_ref, w0t_ref, wddt_ref, w2t_ref, o_ref):
    # x_ref:    (TB, 784)  f32  raw activations (bf16 cast done here, VPU slot)
    # w0t_ref:  (784, 256) bf16 == W0^T   (VMEM-resident across grid steps)
    # wddt_ref: (256, 256) bf16 == Wdd^T
    # w2t_ref:  (256, 128) bf16 == W2^T zero-padded to 128 output lanes
    # o_ref:    (TB, 128)  f32
    xb = x_ref[...].astype(jnp.bfloat16)
    x = jnp.dot(xb, w0t_ref[...], preferred_element_type=jnp.float32)
    c = x                                   # carried residual, f32
    wddt = wddt_ref[...]
    xb = x.astype(jnp.bfloat16)
    # Fixed trip count -> static unroll: 4 serial MXU matmuls + VPU fma, with
    # the bf16 copy of x produced in the same pass as the fma so the f32
    # tensor is not re-read just for the cast (v5e vst-slot pressure).
    for _ in range(N_STEPS):
        g = jnp.dot(xb, wddt, preferred_element_type=jnp.float32)
        x = g * x + c
        xb = x.astype(jnp.bfloat16)
    # TODO(synk): if downstream accepts bf16, store o_ref as bf16 to halve the
    # writeback stream on HBM-read-bound v6e (precision is already bf16-matmul
    # limited).
    o_ref[...] = jnp.dot(xb, w2t_ref[...], preferred_element_type=jnp.float32)


def prepare_params(w0, wdd, w2):
    """One-time weight prep: transpose, bf16 cast, lane-pad the 10-wide head."""
    w0t = w0.T.astype(jnp.bfloat16)                                   # (784, 256)
    wddt = wdd.T.astype(jnp.bfloat16)                                 # (256, 256)
    w2t = jnp.zeros((HID, OUT_PAD), jnp.bfloat16)
    w2t = w2t.at[:, :OUT_DIM].set(w2.T.astype(jnp.bfloat16))          # (256, 128)
    return w0t, wddt, w2t


def denseddnet_forward(x, w0t, wddt, w2t, *, tb=None):
    """x: (B, 784) f32 (or bf16); weights pre-prepared by prepare_params()."""
    B = x.shape[0]
    if tb is None:
        tb = _choose_tb(B)
    grid = _cdiv(B, tb)       # partial edge block: masked DMA, rows sliced off

    bytes_per_elem = x.dtype.itemsize
    flops = 2 * B * (IN_DIM * HID + N_STEPS * HID * HID + HID * OUT_PAD)
    bytes_accessed = (B * (IN_DIM * bytes_per_elem + OUT_PAD * 4)
                      + 2 * (IN_DIM * HID + HID * HID + HID * OUT_PAD))

    out = pl.pallas_call(
        denseddnet_kernel,
        out_shape=jax.ShapeDtypeStruct((B, OUT_PAD), jnp.float32),
        grid=(grid,),
        in_specs=[
            # Activation tile streams per grid step (double-buffered by Pallas).
            pl.BlockSpec((tb, IN_DIM), lambda i: (i, 0)),
            # Weights: constant index_map -> fetched once, VMEM-resident.
            # TODO(synk): pipeline_mode=pl.Buffered(1) here would drop the
            # redundant second weight buffer if TB is ever pushed to the v7x
            # VMEM limit; irrelevant at today's ~7 MiB footprint.
            pl.BlockSpec((IN_DIM, HID), lambda i: (0, 0)),
            pl.BlockSpec((HID, HID), lambda i: (0, 0)),
            pl.BlockSpec((HID, OUT_PAD), lambda i: (0, 0)),
        ],
        out_specs=pl.BlockSpec((tb, OUT_PAD), lambda i: (i, 0)),
        compiler_params=pltpu.CompilerParams(
            dimension_semantics=("parallel",)),
        cost_estimate=pl.CostEstimate(
            flops=flops, transcendentals=0, bytes_accessed=bytes_accessed),
    )(x, w0t, wddt, w2t)
    return out[:, :OUT_DIM]


def reference_forward_f32(x, w0, wdd, w2):
    """Pure-JAX f32 reference mirroring the PyTorch module."""
    h = x @ w0.T
    c = h
    for _ in range(N_STEPS):
        g = h @ wdd.T
        h = g * h + c
    return h @ w2.T


def reference_forward_matched(x, w0, wdd, w2):
    """Precision-matched reference: bf16 matmul operands, f32 accumulation."""
    h = jnp.dot(x.astype(jnp.bfloat16), w0.T.astype(jnp.bfloat16),
                preferred_element_type=jnp.float32)
    c = h
    wddt = wdd.T.astype(jnp.bfloat16)
    for _ in range(N_STEPS):
        g = jnp.dot(h.astype(jnp.bfloat16), wddt,
                    preferred_element_type=jnp.float32)
        h = g * h + c
    return jnp.dot(h.astype(jnp.bfloat16), w2.T.astype(jnp.bfloat16),
                   preferred_element_type=jnp.float32)


if __name__ == "__main__":
    key = jax.random.PRNGKey(0)
    kx, k0, k1, k2 = jax.random.split(key, 4)

    # Deterministic synthetic parameters (same shapes as the nn.Linear weights).
    w0 = jax.random.normal(k0, (HID, IN_DIM), dtype=jnp.float32) * 0.02
    wdd = jax.random.normal(k1, (HID, HID), dtype=jnp.float32) * 0.02
    w2 = jax.random.normal(k2, (OUT_DIM, HID), dtype=jnp.float32) * 0.02

    # Hoisted, one-time weight prep (transpose + pad + bf16 cast).
    w0t, wddt, w2t = prepare_params(w0, wdd, w2)
    fwd = jax.jit(functools.partial(denseddnet_forward, tb=None))

    ok = True
    # Small harness batch (8) plus a larger, non-tile-aligned batch (300) that
    # exercises the adaptive tile (tb=152), the 2-step parallel grid, and the
    # masked partial edge block.
    for B in (8, 300):
        x = jax.random.normal(kx, (B, IN_DIM), dtype=jnp.float32)
        out = jax.block_until_ready(fwd(x, w0t, wddt, w2t))
        assert out.shape == (B, OUT_DIM), out.shape

        ref_m = reference_forward_matched(x, w0, wdd, w2)
        ref_f = reference_forward_f32(x, w0, wdd, w2)
        # Tight check against the precision-matched reference.
        assert jnp.allclose(out, ref_m, rtol=1e-3, atol=1e-3), (
            B, float(jnp.max(jnp.abs(out - ref_m))))
        # Loose sanity check against the pure-f32 reference (bf16 matmuls).
        assert jnp.allclose(out, ref_f, rtol=1e-1, atol=1e-1), (
            B, float(jnp.max(jnp.abs(out - ref_f))))
        ok = ok and True

    if ok:
        print("KERNEL_OK")
</pallas_src>

<mosaic_0001>
module attributes {stable_mosaic.version = 11 : i64} {
  func.func @denseddnet_kernel(%arg0: i32, %arg1: memref<8x784xf32, #tpu.memory_space<vmem>>, %arg2: memref<784x256xbf16, #tpu.memory_space<vmem>>, %arg3: memref<256x256xbf16, #tpu.memory_space<vmem>>, %arg4: memref<256x128xbf16, #tpu.memory_space<vmem>>, %arg5: memref<8x128xf32, #tpu.memory_space<vmem>>) attributes {dimension_semantics = [#tpu.dimension_semantics<parallel>], iteration_bounds = array<i64: 1>, scalar_prefetch = 0 : i64, scratch_operands = 0 : i64, tpu.core_type = #tpu.core_type<tc>, window_params = [{transform_indices = @transform_0, window_bounds = array<i64: 8, 784>}, {pipeline_mode = #tpu.pipeline_mode<synchronous>, transform_indices = @transform_1, window_bounds = array<i64: 784, 256>}, {pipeline_mode = #tpu.pipeline_mode<synchronous>, transform_indices = @transform_2, window_bounds = array<i64: 256, 256>}, {pipeline_mode = #tpu.pipeline_mode<synchronous>, transform_indices = @transform_3, window_bounds = array<i64: 256, 128>}, {transform_indices = @transform_4, window_bounds = array<i64: 8, 128>}]} {
    %c0 = arith.constant 0 : index
    %c0_0 = arith.constant 0 : index
    %0 = vector.load %arg1[%c0, %c0_0] : memref<8x784xf32, #tpu.memory_space<vmem>>, vector<8x784xf32>
    %1 = arith.truncf %0 : vector<8x784xf32> to vector<8x784xbf16>
    %c0_1 = arith.constant 0 : index
    %c0_2 = arith.constant 0 : index
    %2 = vector.load %arg2[%c0_1, %c0_2] : memref<784x256xbf16, #tpu.memory_space<vmem>>, vector<784x256xbf16>
    %cst = arith.constant dense<0.000000e+00> : vector<8x256xf32>
    %3 = tpu.matmul %1, %2, %cst {dimension_numbers = #tpu.dot_dimension_numbers<[1], [0], [0], [1], [0, 0, 1, 1], [], []>} : vector<8x784xbf16>, vector<784x256xbf16>, vector<8x256xf32> -> vector<8x256xf32>
    %c0_3 = arith.constant 0 : index
    %c0_4 = arith.constant 0 : index
    %4 = vector.load %arg3[%c0_3, %c0_4] : memref<256x256xbf16, #tpu.memory_space<vmem>>, vector<256x256xbf16>
    %5 = arith.truncf %3 : vector<8x256xf32> to vector<8x256xbf16>
    %cst_5 = arith.constant dense<0.000000e+00> : vector<8x256xf32>
    %6 = tpu.matmul %5, %4, %cst_5 {dimension_numbers = #tpu.dot_dimension_numbers<[1], [0], [0], [1], [0, 0, 1, 1], [], []>} : vector<8x256xbf16>, vector<256x256xbf16>, vector<8x256xf32> -> vector<8x256xf32>
    %7 = arith.mulf %6, %3 : vector<8x256xf32>
    %8 = arith.addf %7, %3 : vector<8x256xf32>
    %9 = arith.truncf %8 : vector<8x256xf32> to vector<8x256xbf16>
    %cst_6 = arith.constant dense<0.000000e+00> : vector<8x256xf32>
    %10 = tpu.matmul %9, %4, %cst_6 {dimension_numbers = #tpu.dot_dimension_numbers<[1], [0], [0], [1], [0, 0, 1, 1], [], []>} : vector<8x256xbf16>, vector<256x256xbf16>, vector<8x256xf32> -> vector<8x256xf32>
    %11 = arith.mulf %10, %8 : vector<8x256xf32>
    %12 = arith.addf %11, %3 : vector<8x256xf32>
    %13 = arith.truncf %12 : vector<8x256xf32> to vector<8x256xbf16>
    %cst_7 = arith.constant dense<0.000000e+00> : vector<8x256xf32>
    %14 = tpu.matmul %13, %4, %cst_7 {dimension_numbers = #tpu.dot_dimension_numbers<[1], [0], [0], [1], [0, 0, 1, 1], [], []>} : vector<8x256xbf16>, vector<256x256xbf16>, vector<8x256xf32> -> vector<8x256xf32>
    %15 = arith.mulf %14, %12 : vector<8x256xf32>
    %16 = arith.addf %15, %3 : vector<8x256xf32>
    %17 = arith.truncf %16 : vector<8x256xf32> to vector<8x256xbf16>
    %cst_8 = arith.constant dense<0.000000e+00> : vector<8x256xf32>
    %18 = tpu.matmul %17, %4, %cst_8 {dimension_numbers = #tpu.dot_dimension_numbers<[1], [0], [0], [1], [0, 0, 1, 1], [], []>} : vector<8x256xbf16>, vector<256x256xbf16>, vector<8x256xf32> -> vector<8x256xf32>
    %19 = arith.mulf %18, %16 : vector<8x256xf32>
    %20 = arith.addf %19, %3 : vector<8x256xf32>
    %21 = arith.truncf %20 : vector<8x256xf32> to vector<8x256xbf16>
    %c0_9 = arith.constant 0 : index
    %c0_10 = arith.constant 0 : index
    %22 = vector.load %arg4[%c0_9, %c0_10] : memref<256x128xbf16, #tpu.memory_space<vmem>>, vector<256x128xbf16>
    %cst_11 = arith.constant dense<0.000000e+00> : vector<8x128xf32>
    %23 = tpu.matmul %21, %22, %cst_11 {dimension_numbers = #tpu.dot_dimension_numbers<[1], [0], [0], [1], [0, 0, 1, 1], [], []>} : vector<8x256xbf16>, vector<256x128xbf16>, vector<8x128xf32> -> vector<8x128xf32>
    %c0_12 = arith.constant 0 : index
    %c0_13 = arith.constant 0 : index
    %24 = vector.load %arg5[%c0_12, %c0_13] : memref<8x128xf32, #tpu.memory_space<vmem>>, vector<8x128xf32>
    tpu.vector_store %arg5[%c0_12, %c0_13], %23 {strides = array<i32>} : memref<8x128xf32, #tpu.memory_space<vmem>>, vector<8x128xf32>,
    return
  }
  func.func @transform_0(%arg0: i32) -> (i32, i32) {
    %c0_i32 = arith.constant 0 : i32
    %c0_i32_0 = arith.constant 0 : i32
    return %arg0, %c0_i32 : i32, i32
  }
  func.func @transform_1(%arg0: i32) -> (i32, i32) {
    %c0_i32 = arith.constant 0 : i32
    %c0_i32_0 = arith.constant 0 : i32
    %c0_i32_1 = arith.constant 0 : i32
    return %c0_i32, %c0_i32_0 : i32, i32
  }
  func.func @transform_2(%arg0: i32) -> (i32, i32) {
    %c0_i32 = arith.constant 0 : i32
    %c0_i32_0 = arith.constant 0 : i32
    %c0_i32_1 = arith.constant 0 : i32
    return %c0_i32, %c0_i32_0 : i32, i32
  }
  func.func @transform_3(%arg0: i32) -> (i32, i32) {
    %c0_i32 = arith.constant 0 : i32
    %c0_i32_0 = arith.constant 0 : i32
    %c0_i32_1 = arith.constant 0 : i32
    return %c0_i32, %c0_i32_0 : i32, i32
  }
  func.func @transform_4(%arg0: i32) -> (i32, i32) {
    %c0_i32 = arith.constant 0 : i32
    %c0_i32_0 = arith.constant 0 : i32
    return %arg0, %c0_i32 : i32, i32
  }
}

</mosaic_0001>

<llo_original>
// kernel: denseddnet_forward.1
$region0: #{denseddnet_forward.1}
  #allocation0 [shape = 'u32[]', space=smem, size = 0x4, offset = 0x4, fixed_abs, tag = 'smem constant byte address 0x4 - core index']
  #allocation1 [shape = 'u32[144,128]{1,0:T(1,128)}', space=vmem, size = 0x12000, scoped, tag = 'internal scratch']
  %s0 = inlined_call_operand.hbm [shape: f32[8,784], index: 0, kind: input, shape index: {}]
  %s1 = inlined_call_operand.hbm [shape: bf16[784,256], index: 1, kind: input, shape index: {}]
  %s2 = inlined_call_operand.hbm [shape: bf16[256,256], index: 2, kind: input, shape index: {}]
  %s3 = inlined_call_operand.hbm [shape: bf16[256,128], index: 3, kind: input, shape index: {}]
  %s4 = inlined_call_operand.hbm [shape: f32[8,128], index: 4, kind: output, shape index: {}]
  %s5 = sld [smem:[#allocation0]]
  $region42: #{denseddnet_forward.1} parent=0
    _
  %s7 = ssub.s32 1, %s5
  %s8 = scalar_select 0, %s7, %s5
  $region1: #{denseddnet_forward.1} parent=0
    #allocation2 [shape = 'u8[28672]{0}', space=vmem, size = 0x7000, scoped, tag = 'input window, operand 0, single buffered']
    #allocation3 [shape = 's32[1]{0}', space=sflag, size = 0x4, scoped, tag = 'scoped memory for denseddnet_forward.1']
    #allocation4 [shape = 's32[1]{0}', space=sflag, size = 0x4, scoped, tag = 'scoped memory for denseddnet_forward.1']
    #allocation5 [shape = 'u8[401408]{0}', space=vmem, size = 0x62000, scoped, tag = 'input window, operand 1, single buffered']
    #allocation6 [shape = 's32[1]{0}', space=sflag, size = 0x4, scoped, tag = 'scoped memory for denseddnet_forward.1']
    #allocation7 [shape = 'u8[131072]{0}', space=vmem, size = 0x20000, scoped, tag = 'input window, operand 2, single buffered']
    #allocation8 [shape = 'u8[65536]{0}', space=vmem, size = 0x10000, scoped, tag = 'input window, operand 3, single buffered']
    #allocation9 [shape = 's32[1]{0}', space=sflag, size = 0x4, scoped, tag = 'scoped memory for denseddnet_forward.1']
    #allocation10 [shape = 'u8[4096]{0}', space=vmem, size = 0x1000, scoped, tag = 'output window, operand 0, single buffered']
    %9 = vsyncpa [#allocation3], 0
    %10 = vsyncpa [#allocation6], 0
    %11 = vsyncpa [#allocation9], 0
    %12 = vsyncpa [#allocation4], 0
    // Predicated region
    $region2: #{denseddnet_forward.1} parent=1 // pred_check
      _
    $region3: #{denseddnet_forward.1} parent=1 // pred_check_branch
      %14 = sbr.rel (0) target = $region5
    $region4: #{denseddnet_forward.1} parent=1 // pred_region
      %s16 = ssub.s32 896, 896
      %17 = vsyncadd [#allocation3], %s16
      %s19 = sshll.u32 [#allocation2], 4
      %s20 = int_to_ptr.vmem [resolvable:$true] %s19
      %22 = dma.hbm_to_vmem [thread:$0]  %s0, 896, %s20, [#allocation3]
    $region5: #{denseddnet_forward.1} parent=1 // pred_fallthru
      _
    // Predicated region
    $region6: #{denseddnet_forward.1} parent=1 // pred_check
      _
    $region7: #{denseddnet_forward.1} parent=1 // pred_check_branch
      %24 = sbr.rel (0) target = $region9
    $region8: #{denseddnet_forward.1} parent=1 // pred_region
      %s26 = ssub.s32 12544, 12544
      %27 = vsyncadd [#allocation6], %s26
      %s28 = sshll.u32 [#allocation5], 4
      %s29 = int_to_ptr.vmem [resolvable:$true] %s28
      %34 = dma.hbm_to_vmem [thread:$0]  %s1, 12544, %s29, [#allocation6], 128, 128, 8
    $region9: #{denseddnet_forward.1} parent=1 // pred_fallthru
      _
    // Predicated region
    $region10: #{denseddnet_forward.1} parent=1 // pred_check
      _
    $region11: #{denseddnet_forward.1} parent=1 // pred_check_branch
      %36 = sbr.rel (0) target = $region13
    $region12: #{denseddnet_forward.1} parent=1 // pred_region
      %s38 = ssub.s32 4096, 4096
      %39 = vsyncadd [#allocation6], %s38
      %s40 = sshll.u32 [#allocation7], 4
      %s41 = int_to_ptr.vmem [resolvable:$true] %s40
      %46 = dma.hbm_to_vmem [thread:$0]  %s2, 4096, %s41, [#allocation6], 128, 128, 8
    $region13: #{denseddnet_forward.1} parent=1 // pred_fallthru
      _
    // Predicated region
    $region14: #{denseddnet_forward.1} parent=1 // pred_check
      _
    $region15: #{denseddnet_forward.1} parent=1 // pred_check_branch
      %48 = sbr.rel (0) target = $region17
    $region16: #{denseddnet_forward.1} parent=1 // pred_region
      %s50 = ssub.s32 2048, 2048
      %51 = vsyncadd [#allocation9], %s50
      %s52 = sshll.u32 [#allocation8], 4
      %s53 = int_to_ptr.vmem [resolvable:$true] %s52
      %58 = dma.hbm_to_vmem [thread:$0]  %s3, 2048, %s53, [#allocation9], 64, 64, 4
    $region17: #{denseddnet_forward.1} parent=1 // pred_fallthru
      _
    // Predicated region
    $region18: #{denseddnet_forward.1} parent=1 // pred_check
      _
    $region19: #{denseddnet_forward.1} parent=1 // pred_check_branch
      %60 = sbr.rel (0) target = $region21
    $region20: #{denseddnet_forward.1} parent=1 // pred_region
      %61 = dma.done [#allocation3], 896
    $region21: #{denseddnet_forward.1} parent=1 // pred_fallthru
      _
    // Predicated region
    $region22: #{denseddnet_forward.1} parent=1 // pred_check
      _
    $region23: #{denseddnet_forward.1} parent=1 // pred_check_branch
      %63 = sbr.rel (0) target = $region25
    $region24: #{denseddnet_forward.1} parent=1 // pred_region
      %64 = dma.done [#allocation6], 12544
    $region25: #{denseddnet_forward.1} parent=1 // pred_fallthru
      _
    // Predicated region
    $region26: #{denseddnet_forward.1} parent=1 // pred_check
      _
    $region27: #{denseddnet_forward.1} parent=1 // pred_check_branch
      %66 = sbr.rel (0) target = $region29
    $region28: #{denseddnet_forward.1} parent=1 // pred_region
      %67 = dma.done [#allocation6], 4096
    $region29: #{denseddnet_forward.1} parent=1 // pred_fallthru
      _
    // Predicated region
    $region30: #{denseddnet_forward.1} parent=1 // pred_check
      _
    $region31: #{denseddnet_forward.1} parent=1 // pred_check_branch
      %69 = sbr.rel (0) target = $region33
    $region32: #{denseddnet_forward.1} parent=1 // pred_region
      %70 = dma.done [#allocation9], 2048
    $region33: #{denseddnet_forward.1} parent=1 // pred_fallthru
      _
    %v72 = vld [vmem:[#allocation2] sm:$0xff]
    %v73 = vld [vmem:[#allocation2 + $0x8] sm:$0xff]
    %v74 = vld [vmem:[#allocation2 + $0x10] sm:$0xff]
    %v75 = vld [vmem:[#allocation2 + $0x18] sm:$0xff]
    %v76 = vld [vmem:[#allocation2 + $0x20] sm:$0xff]
    %v77 = vld [vmem:[#allocation2 + $0x28] sm:$0xff]
    %v78 = vld [vmem:[#allocation2 + $0x30] sm:$0xff]
    %v79 = vpack.c.bf16 %v72, %v72
    %v80 = vpack.c.bf16 %v73, %v73
    %v81 = vpack.c.bf16 %v74, %v74
    %v82 = vpack.c.bf16 %v75, %v75
    %v83 = vpack.c.bf16 %v76, %v76
    %v84 = vpack.c.bf16 %v77, %v77
    %v85 = vpack.c.bf16 %v78, %v78
    %v86 = vld [vmem:[#allocation5] sm:$0xff]
    %v87 = vld [vmem:[#allocation5 + $0x8] sm:$0xff]
    %v88 = vld [vmem:[#allocation5 + $0x10] sm:$0xff]
    %v89 = vld [vmem:[#allocation5 + $0x18] sm:$0xff]
    %v90 = vld [vmem:[#allocation5 + $0x20] sm:$0xff]
    %v91 = vld [vmem:[#allocation5 + $0x28] sm:$0xff]
    %v92 = vld [vmem:[#allocation5 + $0x30] sm:$0xff]
    %v93 = vld [vmem:[#allocation5 + $0x38] sm:$0xff]
    %v94 = vld [vmem:[#allocation5 + $0x40] sm:$0xff]
    %v95 = vld [vmem:[#allocation5 + $0x48] sm:$0xff]
    %v96 = vld [vmem:[#allocation5 + $0x50] sm:$0xff]
    %v97 = vld [vmem:[#allocation5 + $0x58] sm:$0xff]
    %v98 = vld [vmem:[#allocation5 + $0x60] sm:$0xff]
    %v99 = vld [vmem:[#allocation5 + $0x68] sm:$0xff]
    %v100 = vld [vmem:[#allocation5 + $0x70] sm:$0xff]
    %v101 = vld [vmem:[#allocation5 + $0x78] sm:$0xff]
    %v102 = vld [vmem:[#allocation5 + $0x80] sm:$0xff]
    %v103 = vld [vmem:[#allocation5 + $0x88] sm:$0xff]
    %v104 = vld [vmem:[#allocation5 + $0x90] sm:$0xff]
    %v105 = vld [vmem:[#allocation5 + $0x98] sm:$0xff]
    %v106 = vld [vmem:[#allocation5 + $0xa0] sm:$0xff]
    %v107 = vld [vmem:[#allocation5 + $0xa8] sm:$0xff]
    %v108 = vld [vmem:[#allocation5 + $0xb0] sm:$0xff]
    %v109 = vld [vmem:[#allocation5 + $0xb8] sm:$0xff]
    %v110 = vld [vmem:[#allocation5 + $0xc0] sm:$0xff]
    %v111 = vld [vmem:[#allocation5 + $0xc8] sm:$0xff]
    %v112 = vld [vmem:[#allocation5 + $0xd0] sm:$0xff]
    %v113 = vld [vmem:[#allocation5 + $0xd8] sm:$0xff]
    %v114 = vld [vmem:[#allocation5 + $0xe0] sm:$0xff]
    %v115 = vld [vmem:[#allocation5 + $0xe8] sm:$0xff]
    %v116 = vld [vmem:[#allocation5 + $0xf0] sm:$0xff]
    %v117 = vld [vmem:[#allocation5 + $0xf8] sm:$0xff]
    %v118 = vld [vmem:[#allocation5 + $0x100] sm:$0xff]
    %v119 = vld [vmem:[#allocation5 + $0x108] sm:$0xff]
    %v120 = vld [vmem:[#allocation5 + $0x110] sm:$0xff]
    %v121 = vld [vmem:[#allocation5 + $0x118] sm:$0xff]
    %v122 = vld [vmem:[#allocation5 + $0x120] sm:$0xff]
    %v123 = vld [vmem:[#allocation5 + $0x128] sm:$0xff]
    %v124 = vld [vmem:[#allocation5 + $0x130] sm:$0xff]
    %v125 = vld [vmem:[#allocation5 + $0x138] sm:$0xff]
    %v126 = vld [vmem:[#allocation5 + $0x140] sm:$0xff]
    %v127 = vld [vmem:[#allocation5 + $0x148] sm:$0xff]
    %v128 = vld [vmem:[#allocation5 + $0x150] sm:$0xff]
    %v129 = vld [vmem:[#allocation5 + $0x158] sm:$0xff]
    %v130 = vld [vmem:[#allocation5 + $0x160] sm:$0xff]
    %v131 = vld [vmem:[#allocation5 + $0x168] sm:$0xff]
    %v132 = vld [vmem:[#allocation5 + $0x170] sm:$0xff]
    %v133 = vld [vmem:[#allocation5 + $0x178] sm:$0xff]
    %v134 = vld [vmem:[#allocation5 + $0x180] sm:$0xff]
    %v135 = vld [vmem:[#allocation5 + $0x188] sm:$0xff]
    %v136 = vld [vmem:[#allocation5 + $0x190] sm:$0xff]
    %v137 = vld [vmem:[#allocation5 + $0x198] sm:$0xff]
    %v138 = vld [vmem:[#allocation5 + $0x1a0] sm:$0xff]
    %v139 = vld [vmem:[#allocation5 + $0x1a8] sm:$0xff]
    %v140 = vld [vmem:[#allocation5 + $0x1b0] sm:$0xff]
    %v141 = vld [vmem:[#allocation5 + $0x1b8] sm:$0xff]
    %v142 = vld [vmem:[#allocation5 + $0x1c0] sm:$0xff]
    %v143 = vld [vmem:[#allocation5 + $0x1c8] sm:$0xff]
    %v144 = vld [vmem:[#allocation5 + $0x1d0] sm:$0xff]
    %v145 = vld [vmem:[#allocation5 + $0x1d8] sm:$0xff]
    %v146 = vld [vmem:[#allocation5 + $0x1e0] sm:$0xff]
    %v147 = vld [vmem:[#allocation5 + $0x1e8] sm:$0xff]
    %v148 = vld [vmem:[#allocation5 + $0x1f0] sm:$0xff]
    %v149 = vld [vmem:[#allocation5 + $0x1f8] sm:$0xff]
    %v150 = vld [vmem:[#allocation5 + $0x200] sm:$0xff]
    %v151 = vld [vmem:[#allocation5 + $0x208] sm:$0xff]
    %v152 = vld [vmem:[#allocation5 + $0x210] sm:$0xff]
    %v153 = vld [vmem:[#allocation5 + $0x218] sm:$0xff]
    %v154 = vld [vmem:[#allocation5 + $0x220] sm:$0xff]
    %v155 = vld [vmem:[#allocation5 + $0x228] sm:$0xff]
    %v156 = vld [vmem:[#allocation5 + $0x230] sm:$0xff]
    %v157 = vld [vmem:[#allocation5 + $0x238] sm:$0xff]
    %v158 = vld [vmem:[#allocation5 + $0x240] sm:$0xff]
    %v159 = vld [vmem:[#allocation5 + $0x248] sm:$0xff]
    %v160 = vld [vmem:[#allocation5 + $0x250] sm:$0xff]
    %v161 = vld [vmem:[#allocation5 + $0x258] sm:$0xff]
    %v162 = vld [vmem:[#allocation5 + $0x260] sm:$0xff]
    %v163 = vld [vmem:[#allocation5 + $0x268] sm:$0xff]
    %v164 = vld [vmem:[#allocation5 + $0x270] sm:$0xff]
    %v165 = vld [vmem:[#allocation5 + $0x278] sm:$0xff]
    %v166 = vld [vmem:[#allocation5 + $0x280] sm:$0xff]
    %v167 = vld [vmem:[#allocation5 + $0x288] sm:$0xff]
    %v168 = vld [vmem:[#allocation5 + $0x290] sm:$0xff]
    %v169 = vld [vmem:[#allocation5 + $0x298] sm:$0xff]
    %v170 = vld [vmem:[#allocation5 + $0x2a0] sm:$0xff]
    %v171 = vld [vmem:[#allocation5 + $0x2a8] sm:$0xff]
    %v172 = vld [vmem:[#allocation5 + $0x2b0] sm:$0xff]
    %v173 = vld [vmem:[#allocation5 + $0x2b8] sm:$0xff]
    %v174 = vld [vmem:[#allocation5 + $0x2c0] sm:$0xff]
    %v175 = vld [vmem:[#allocation5 + $0x2c8] sm:$0xff]
    %v176 = vld [vmem:[#allocation5 + $0x2d0] sm:$0xff]
    %v177 = vld [vmem:[#allocation5 + $0x2d8] sm:$0xff]
    %v178 = vld [vmem:[#allocation5 + $0x2e0] sm:$0xff]
    %v179 = vld [vmem:[#allocation5 + $0x2e8] sm:$0xff]
    %v180 = vld [vmem:[#allocation5 + $0x2f0] sm:$0xff]
    %v181 = vld [vmem:[#allocation5 + $0x2f8] sm:$0xff]
    %v182 = vld [vmem:[#allocation5 + $0x300] sm:$0xff]
    %v183 = vld [vmem:[#allocation5 + $0x308] sm:$0xff]
    %v282 = vunpack.c.l.b16 %v86
    %v283 = vunpack.c.h.b16 %v86
    %v284 = vunpack.c.l.b16 %v87
    %v285 = vunpack.c.h.b16 %v87
    %v286 = vunpack.c.l.b16 %v88
    %v287 = vunpack.c.h.b16 %v88
    %v288 = vunpack.c.l.b16 %v89
    %v289 = vunpack.c.h.b16 %v89
    %v290 = vunpack.c.l.b16 %v90
    %v291 = vunpack.c.h.b16 %v90
    %v292 = vunpack.c.l.b16 %v91
    %v293 = vunpack.c.h.b16 %v91
    %v294 = vunpack.c.l.b16 %v92
    %v295 = vunpack.c.h.b16 %v92
    %v296 = vunpack.c.l.b16 %v93
    %v297 = vunpack.c.h.b16 %v93
    %v298 = vunpack.c.l.b16 %v94
    %v299 = vunpack.c.h.b16 %v94
    %v300 = vunpack.c.l.b16 %v95
    %v301 = vunpack.c.h.b16 %v95
    %v302 = vunpack.c.l.b16 %v96
    %v303 = vunpack.c.h.b16 %v96
    %v304 = vunpack.c.l.b16 %v97
    %v305 = vunpack.c.h.b16 %v97
    %v306 = vunpack.c.l.b16 %v98
    %v307 = vunpack.c.h.b16 %v98
    %v308 = vunpack.c.l.b16 %v99
    %v309 = vunpack.c.h.b16 %v99
    %v310 = vunpack.c.l.b16 %v100
    %v311 = vunpack.c.h.b16 %v100
    %v312 = vunpack.c.l.b16 %v101
    %v313 = vunpack.c.h.b16 %v101
    %v314 = vunpack.c.l.b16 %v102
    %v315 = vunpack.c.h.b16 %v102
    %v316 = vunpack.c.l.b16 %v103
    %v317 = vunpack.c.h.b16 %v103
    %v318 = vunpack.c.l.b16 %v104
    %v319 = vunpack.c.h.b16 %v104
    %v320 = vunpack.c.l.b16 %v105
    %v321 = vunpack.c.h.b16 %v105
    %v322 = vunpack.c.l.b16 %v106
    %v323 = vunpack.c.h.b16 %v106
    %v324 = vunpack.c.l.b16 %v107
    %v325 = vunpack.c.h.b16 %v107
    %v326 = vunpack.c.l.b16 %v108
    %v327 = vunpack.c.h.b16 %v108
    %v328 = vunpack.c.l.b16 %v109
    %v329 = vunpack.c.h.b16 %v109
    %v330 = vunpack.c.l.b16 %v110
    %v331 = vunpack.c.h.b16 %v110
    %v332 = vunpack.c.l.b16 %v111
    %v333 = vunpack.c.h.b16 %v111
    %v334 = vunpack.c.l.b16 %v112
    %v335 = vunpack.c.h.b16 %v112
    %v336 = vunpack.c.l.b16 %v113
    %v337 = vunpack.c.h.b16 %v113
    %v338 = vunpack.c.l.b16 %v114
    %v339 = vunpack.c.h.b16 %v114
    %v340 = vunpack.c.l.b16 %v115
    %v341 = vunpack.c.h.b16 %v115
    %v342 = vunpack.c.l.b16 %v116
    %v343 = vunpack.c.h.b16 %v116
    %v344 = vunpack.c.l.b16 %v117
    %v345 = vunpack.c.h.b16 %v117
    %v346 = vunpack.c.l.b16 %v118
    %v347 = vunpack.c.h.b16 %v118
    %v348 = vunpack.c.l.b16 %v119
    %v349 = vunpack.c.h.b16 %v119
    %v350 = vunpack.c.l.b16 %v120
    %v351 = vunpack.c.h.b16 %v120
    %v352 = vunpack.c.l.b16 %v121
    %v353 = vunpack.c.h.b16 %v121
    %v354 = vunpack.c.l.b16 %v122
    %v355 = vunpack.c.h.b16 %v122
    %v356 = vunpack.c.l.b16 %v123
    %v357 = vunpack.c.h.b16 %v123
    %v358 = vunpack.c.l.b16 %v124
    %v359 = vunpack.c.h.b16 %v124
    %v360 = vunpack.c.l.b16 %v125
    %v361 = vunpack.c.h.b16 %v125
    %v362 = vunpack.c.l.b16 %v126
    %v363 = vunpack.c.h.b16 %v126
    %v364 = vunpack.c.l.b16 %v127
    %v365 = vunpack.c.h.b16 %v127
    %v366 = vunpack.c.l.b16 %v128
    %v367 = vunpack.c.h.b16 %v128
    %v368 = vunpack.c.l.b16 %v129
    %v369 = vunpack.c.h.b16 %v129
    %v370 = vunpack.c.l.b16 %v130
    %v371 = vunpack.c.h.b16 %v130
    %v372 = vunpack.c.l.b16 %v131
    %v373 = vunpack.c.h.b16 %v131
    %v374 = vunpack.c.l.b16 %v132
    %v375 = vunpack.c.h.b16 %v132
    %v376 = vunpack.c.l.b16 %v133
    %v377 = vunpack.c.h.b16 %v133
    %v378 = vunpack.c.l.b16 %v134
    %v379 = vunpack.c.h.b16 %v134
    %v380 = vunpack.c.l.b16 %v135
    %v381 = vunpack.c.h.b16 %v135
    %v382 = vunpack.c.l.b16 %v136
    %v383 = vunpack.c.h.b16 %v136
    %v384 = vunpack.c.l.b16 %v137
    %v385 = vunpack.c.h.b16 %v137
    %v386 = vunpack.c.l.b16 %v138
    %v387 = vunpack.c.h.b16 %v138
    %v388 = vunpack.c.l.b16 %v139
    %v389 = vunpack.c.h.b16 %v139
    %v390 = vunpack.c.l.b16 %v140
    %v391 = vunpack.c.h.b16 %v140
    %v392 = vunpack.c.l.b16 %v141
    %v393 = vunpack.c.h.b16 %v141
    %v394 = vunpack.c.l.b16 %v142
    %v395 = vunpack.c.h.b16 %v142
    %v396 = vunpack.c.l.b16 %v143
    %v397 = vunpack.c.h.b16 %v143
    %v398 = vunpack.c.l.b16 %v144
    %v399 = vunpack.c.h.b16 %v144
    %v400 = vunpack.c.l.b16 %v145
    %v401 = vunpack.c.h.b16 %v145
    %v402 = vunpack.c.l.b16 %v146
    %v403 = vunpack.c.h.b16 %v146
    %v404 = vunpack.c.l.b16 %v147
    %v405 = vunpack.c.h.b16 %v147
    %v406 = vunpack.c.l.b16 %v148
    %v407 = vunpack.c.h.b16 %v148
    %v408 = vunpack.c.l.b16 %v149
    %v409 = vunpack.c.h.b16 %v149
    %v410 = vunpack.c.l.b16 %v150
    %v411 = vunpack.c.h.b16 %v150
    %v412 = vunpack.c.l.b16 %v151
    %v413 = vunpack.c.h.b16 %v151
    %v414 = vunpack.c.l.b16 %v152
    %v415 = vunpack.c.h.b16 %v152
    %v416 = vunpack.c.l.b16 %v153
    %v417 = vunpack.c.h.b16 %v153
    %v418 = vunpack.c.l.b16 %v154
    %v419 = vunpack.c.h.b16 %v154
    %v420 = vunpack.c.l.b16 %v155
    %v421 = vunpack.c.h.b16 %v155
    %v422 = vunpack.c.l.b16 %v156
    %v423 = vunpack.c.h.b16 %v156
    %v424 = vunpack.c.l.b16 %v157
    %v425 = vunpack.c.h.b16 %v157
    %v426 = vunpack.c.l.b16 %v158
    %v427 = vunpack.c.h.b16 %v158
    %v428 = vunpack.c.l.b16 %v159
    %v429 = vunpack.c.h.b16 %v159
    %v430 = vunpack.c.l.b16 %v160
    %v431 = vunpack.c.h.b16 %v160
    %v432 = vunpack.c.l.b16 %v161
    %v433 = vunpack.c.h.b16 %v161
    %v434 = vunpack.c.l.b16 %v162
    %v435 = vunpack.c.h.b16 %v162
    %v436 = vunpack.c.l.b16 %v163
    %v437 = vunpack.c.h.b16 %v163
    %v438 = vunpack.c.l.b16 %v164
    %v439 = vunpack.c.h.b16 %v164
    %v440 = vunpack.c.l.b16 %v165
    %v441 = vunpack.c.h.b16 %v165
    %v442 = vunpack.c.l.b16 %v166
    %v443 = vunpack.c.h.b16 %v166
    %v444 = vunpack.c.l.b16 %v167
    %v445 = vunpack.c.h.b16 %v167
    %v446 = vunpack.c.l.b16 %v168
    %v447 = vunpack.c.h.b16 %v168
    %v448 = vunpack.c.l.b16 %v169
    %v449 = vunpack.c.h.b16 %v169
    %v450 = vunpack.c.l.b16 %v170
    %v451 = vunpack.c.h.b16 %v170
    %v452 = vunpack.c.l.b16 %v171
    %v453 = vunpack.c.h.b16 %v171
    %v454 = vunpack.c.l.b16 %v172
    %v455 = vunpack.c.h.b16 %v172
    %v456 = vunpack.c.l.b16 %v173
    %v457 = vunpack.c.h.b16 %v173
    %v458 = vunpack.c.l.b16 %v174
    %v459 = vunpack.c.h.b16 %v174
    %v460 = vunpack.c.l.b16 %v175
    %v461 = vunpack.c.h.b16 %v175
    %v462 = vunpack.c.l.b16 %v176
    %v463 = vunpack.c.h.b16 %v176
    %v464 = vunpack.c.l.b16 %v177
    %v465 = vunpack.c.h.b16 %v177
    %v466 = vunpack.c.l.b16 %v178
    %v467 = vunpack.c.h.b16 %v178
    %v468 = vunpack.c.l.b16 %v179
    %v469 = vunpack.c.h.b16 %v179
    %v470 = vunpack.c.l.b16 %v180
    %v471 = vunpack.c.h.b16 %v180
    %v472 = vunpack.c.l.b16 %v181
    %v473 = vunpack.c.h.b16 %v181
    %v474 = vunpack.c.l.b16 %v182
    %v475 = vunpack.c.h.b16 %v182
    %v476 = vunpack.c.l.b16 %v183
    %v477 = vunpack.c.h.b16 %v183
    %v478 = vpack.c.b16 %v284, %v282
    %v479 = vpack.c.b16 %v285, %v283
    %v480 = vpack.c.b16 %v288, %v286
    %v481 = vpack.c.b16 %v289, %v287
    %v482 = vpack.c.b16 %v292, %v290
    %v483 = vpack.c.b16 %v293, %v291
    %v484 = vpack.c.b16 %v296, %v294
    %v485 = vpack.c.b16 %v297, %v295
    %v486 = vpack.c.b16 %v300, %v298
    %v487 = vpack.c.b16 %v301, %v299
    %v488 = vpack.c.b16 %v304, %v302
    %v489 = vpack.c.b16 %v305, %v303
    %v490 = vpack.c.b16 %v308, %v306
    %v491 = vpack.c.b16 %v309, %v307
    %v492 = vpack.c.b16 %v312, %v310
    %v493 = vpack.c.b16 %v313, %v311
    %v494 = vpack.c.b16 %v316, %v314
    %v495 = vpack.c.b16 %v317, %v315
    %v496 = vpack.c.b16 %v320, %v318
    %v497 = vpack.c.b16 %v321, %v319
    %v498 = vpack.c.b16 %v324, %v322
    %v499 = vpack.c.b16 %v325, %v323
    %v500 = vpack.c.b16 %v328, %v326
    %v501 = vpack.c.b16 %v329, %v327
    %v502 = vpack.c.b16 %v332, %v330
    %v503 = vpack.c.b16 %v333, %v331
    %v504 = vpack.c.b16 %v336, %v334
    %v505 = vpack.c.b16 %v337, %v335
    %v506 = vpack.c.b16 %v340, %v338
    %v507 = vpack.c.b16 %v341, %v339
    %v508 = vpack.c.b16 %v344, %v342
    %v509 = vpack.c.b16 %v345, %v343
    %v510 = vpack.c.b16 %v348, %v346
    %v511 = vpack.c.b16 %v349, %v347
    %v512 = vpack.c.b16 %v352, %v350
    %v513 = vpack.c.b16 %v353, %v351
    %v514 = vpack.c.b16 %v356, %v354
    %v515 = vpack.c.b16 %v357, %v355
    %v516 = vpack.c.b16 %v360, %v358
    %v517 = vpack.c.b16 %v361, %v359
    %v518 = vpack.c.b16 %v364, %v362
    %v519 = vpack.c.b16 %v365, %v363
    %v520 = vpack.c.b16 %v368, %v366
    %v521 = vpack.c.b16 %v369, %v367
    %v522 = vpack.c.b16 %v372, %v370
    %v523 = vpack.c.b16 %v373, %v371
    %v524 = vpack.c.b16 %v376, %v374
    %v525 = vpack.c.b16 %v377, %v375
    %v526 = vpack.c.b16 %v380, %v378
    %v527 = vpack.c.b16 %v381, %v379
    %v528 = vpack.c.b16 %v384, %v382
    %v529 = vpack.c.b16 %v385, %v383
    %v530 = vpack.c.b16 %v388, %v386
    %v531 = vpack.c.b16 %v389, %v387
    %v532 = vpack.c.b16 %v392, %v390
    %v533 = vpack.c.b16 %v393, %v391
    %v534 = vpack.c.b16 %v396, %v394
    %v535 = vpack.c.b16 %v397, %v395
    %v536 = vpack.c.b16 %v400, %v398
    %v537 = vpack.c.b16 %v401, %v399
    %v538 = vpack.c.b16 %v404, %v402
    %v539 = vpack.c.b16 %v405, %v403
    %v540 = vpack.c.b16 %v408, %v406
    %v541 = vpack.c.b16 %v409, %v407
    %v542 = vpack.c.b16 %v412, %v410
    %v543 = vpack.c.b16 %v413, %v411
    %v544 = vpack.c.b16 %v416, %v414
    %v545 = vpack.c.b16 %v417, %v415
    %v546 = vpack.c.b16 %v420, %v418
    %v547 = vpack.c.b16 %v421, %v419
    %v548 = vpack.c.b16 %v424, %v422
    %v549 = vpack.c.b16 %v425, %v423
    %v550 = vpack.c.b16 %v428, %v426
    %v551 = vpack.c.b16 %v429, %v427
    %v552 = vpack.c.b16 %v432, %v430
    %v553 = vpack.c.b16 %v433, %v431
    %v554 = vpack.c.b16 %v436, %v434
    %v555 = vpack.c.b16 %v437, %v435
    %v556 = vpack.c.b16 %v440, %v438
    %v557 = vpack.c.b16 %v441, %v439
    %v558 = vpack.c.b16 %v444, %v442
    %v559 = vpack.c.b16 %v445, %v443
    %v560 = vpack.c.b16 %v448, %v446
    %v561 = vpack.c.b16 %v449, %v447
    %v562 = vpack.c.b16 %v452, %v450
    %v563 = vpack.c.b16 %v453, %v451
    %v564 = vpack.c.b16 %v456, %v454
    %v565 = vpack.c.b16 %v457, %v455
    %v566 = vpack.c.b16 %v460, %v458
    %v567 = vpack.c.b16 %v461, %v459
    %v568 = vpack.c.b16 %v464, %v462
    %v569 = vpack.c.b16 %v465, %v463
    %v570 = vpack.c.b16 %v468, %v466
    %v571 = vpack.c.b16 %v469, %v467
    %v572 = vpack.c.b16 %v472, %v470
    %v573 = vpack.c.b16 %v473, %v471
    %v574 = vpack.c.b16 %v476, %v474
    %v575 = vpack.c.b16 %v477, %v475
    %vm674 = vcmask 130048
    %v676 = vsel %vm674, %v85, 0
    %678 = vmatprep.subr.bf16.mxu0 %v479
    %679 = vmatpush1.bf16.msra.mxu0 %v478
    %680 = vmatprep.subr.bf16.mxu0 %v481
    %681 = vmatpush1.bf16.msra.mxu0 %v480
    %682 = vmatprep.subr.bf16.mxu0 %v483
    %683 = vmatpush1.bf16.msra.mxu0 %v482
    %684 = vmatprep.subr.bf16.mxu0 %v485
    %685 = vmatpush1.bf16.msra.mxu0 %v484
    %686 = vmatprep.subr.bf16.mxu0 %v487
    %687 = vmatpush1.bf16.msra.mxu0 %v486
    %688 = vmatprep.subr.bf16.mxu0 %v489
    %689 = vmatpush1.bf16.msra.mxu0 %v488
    %690 = vmatprep.subr.bf16.mxu0 %v491
    %691 = vmatpush1.bf16.msra.mxu0 %v490
    %692 = vmatprep.subr.bf16.mxu0 %v493
    %693 = vmatpush1.bf16.msra.mxu0 %v492
    %694 = vmatprep.subr.bf16.mxu0 %v495
    %695 = vmatpush1.bf16.msra.mxu0 %v494
    %696 = vmatprep.subr.bf16.mxu0 %v497
    %697 = vmatpush1.bf16.msra.mxu0 %v496
    %698 = vmatprep.subr.bf16.mxu0 %v499
    %699 = vmatpush1.bf16.msra.mxu0 %v498
    %700 = vmatprep.subr.bf16.mxu0 %v501
    %701 = vmatpush1.bf16.msra.mxu0 %v500
    %702 = vmatprep.subr.bf16.mxu0 %v503
    %703 = vmatpush1.bf16.msra.mxu0 %v502
    %704 = vmatprep.subr.bf16.mxu0 %v505
    %705 = vmatpush1.bf16.msra.mxu0 %v504
    %706 = vmatprep.subr.bf16.mxu0 %v507
    %707 = vmatpush1.bf16.msra.mxu0 %v506
    %708 = vmatprep.subr.bf16.mxu0 %v509
    %709 = vmatpush1.bf16.msra.mxu0 %v508
    %710 = vmatprep.mubr.bf16.mxu0 %v80
    %711 = vmatmul.mubr.bf16.gmra.mrb[0].mxu0 %v79
    %v712 = vpop.f32.mrb[0].mxu0
    %v713 = vadd.f32 0.0, %v712
    %v714 = vpop.f32.mrb[0].mxu0
    %v715 = vadd.f32 0.0, %v714
    %v716 = vpop.f32.mrb[0].mxu0
    %v717 = vpop.f32.mrb[0].mxu0
    %718 = vdwg.mxu0
    %719 = vmatprep.subr.bf16.mxu0 %v511
    %720 = vmatpush1.bf16.msra.mxu0 %v510
    %721 = vmatprep.subr.bf16.mxu0 %v513
    %722 = vmatpush1.bf16.msra.mxu0 %v512
    %723 = vmatprep.subr.bf16.mxu0 %v515
    %724 = vmatpush1.bf16.msra.mxu0 %v514
    %725 = vmatprep.subr.bf16.mxu0 %v517
    %726 = vmatpush1.bf16.msra.mxu0 %v516
    %727 = vmatprep.subr.bf16.mxu0 %v519
    %728 = vmatpush1.bf16.msra.mxu0 %v518
    %729 = vmatprep.subr.bf16.mxu0 %v521
    %730 = vmatpush1.bf16.msra.mxu0 %v520
    %731 = vmatprep.subr.bf16.mxu0 %v523
    %732 = vmatpush1.bf16.msra.mxu0 %v522
    %733 = vmatprep.subr.bf16.mxu0 %v525
    %734 = vmatpush1.bf16.msra.mxu0 %v524
    %735 = vmatprep.subr.bf16.mxu0 %v527
    %736 = vmatpush1.bf16.msra.mxu0 %v526
    %737 = vmatprep.subr.bf16.mxu0 %v529
    %738 = vmatpush1.bf16.msra.mxu0 %v528
    %739 = vmatprep.subr.bf16.mxu0 %v531
    %740 = vmatpush1.bf16.msra.mxu0 %v530
    %741 = vmatprep.subr.bf16.mxu0 %v533
    %742 = vmatpush1.bf16.msra.mxu0 %v532
    %743 = vmatprep.subr.bf16.mxu0 %v535
    %744 = vmatpush1.bf16.msra.mxu0 %v534
    %745 = vmatprep.subr.bf16.mxu0 %v537
    %746 = vmatpush1.bf16.msra.mxu0 %v536
    %747 = vmatprep.subr.bf16.mxu0 %v539
    %748 = vmatpush1.bf16.msra.mxu0 %v538
    %749 = vmatprep.subr.bf16.mxu0 %v541
    %750 = vmatpush1.bf16.msra.mxu0 %v540
    %751 = vmatprep.mubr.bf16.mxu0 %v82
    %752 = vmatmul.mubr.bf16.gmra.mrb[0].mxu0 %v81
    %v753 = vpop.f32.mrb[0].mxu0
    %v754 = vadd.f32 %v713, %v753
    %v755 = vpop.f32.mrb[0].mxu0
    %v756 = vadd.f32 %v715, %v755
    %v757 = vpop.f32.mrb[0].mxu0
    %v758 = vpop.f32.mrb[0].mxu0
    %759 = vdwg.mxu0
    %760 = vmatprep.subr.bf16.mxu0 %v543
    %761 = vmatpush1.bf16.msra.mxu0 %v542
    %762 = vmatprep.subr.bf16.mxu0 %v545
    %763 = vmatpush1.bf16.msra.mxu0 %v544
    %764 = vmatprep.subr.bf16.mxu0 %v547
    %765 = vmatpush1.bf16.msra.mxu0 %v546
    %766 = vmatprep.subr.bf16.mxu0 %v549
    %767 = vmatpush1.bf16.msra.mxu0 %v548
    %768 = vmatprep.subr.bf16.mxu0 %v551
    %769 = vmatpush1.bf16.msra.mxu0 %v550
    %770 = vmatprep.subr.bf16.mxu0 %v553
    %771 = vmatpush1.bf16.msra.mxu0 %v552
    %772 = vmatprep.subr.bf16.mxu0 %v555
    %773 = vmatpush1.bf16.msra.mxu0 %v554
    %774 = vmatprep.subr.bf16.mxu0 %v557
    %775 = vmatpush1.bf16.msra.mxu0 %v556
    %776 = vmatprep.subr.bf16.mxu0 %v559
    %777 = vmatpush1.bf16.msra.mxu0 %v558
    %778 = vmatprep.subr.bf16.mxu0 %v561
    %779 = vmatpush1.bf16.msra.mxu0 %v560
    %780 = vmatprep.subr.bf16.mxu0 %v563
    %781 = vmatpush1.bf16.msra.mxu0 %v562
    %782 = vmatprep.subr.bf16.mxu0 %v565
    %783 = vmatpush1.bf16.msra.mxu0 %v564
    %784 = vmatprep.subr.bf16.mxu0 %v567
    %785 = vmatpush1.bf16.msra.mxu0 %v566
    %786 = vmatprep.subr.bf16.mxu0 %v569
    %787 = vmatpush1.bf16.msra.mxu0 %v568
    %788 = vmatprep.subr.bf16.mxu0 %v571
    %789 = vmatpush1.bf16.msra.mxu0 %v570
    %790 = vmatprep.subr.bf16.mxu0 %v573
    %791 = vmatpush1.bf16.msra.mxu0 %v572
    %792 = vmatprep.mubr.bf16.mxu0 %v84
    %793 = vmatmul.mubr.bf16.gmra.mrb[0].mxu0 %v83
    %v794 = vpop.f32.mrb[0].mxu0
    %v795 = vadd.f32 %v754, %v794
    %v796 = vpop.f32.mrb[0].mxu0
    %v797 = vadd.f32 %v756, %v796
    %v798 = vpop.f32.mrb[0].mxu0
    %v799 = vpop.f32.mrb[0].mxu0
    %800 = vdwg.mxu0
    %801 = vmatprep.subr.bf16.mxu0 %v575
    %802 = vmatpush1.bf16.msra.mxu0 %v574
    %803 = vmatprep.subr.bf16.mxu0 0
    %804 = vmatpush1.bf16.msra.mxu0 0
    %805 = vmatprep.subr.bf16.mxu0 0
    %806 = vmatpush1.bf16.msra.mxu0 0
    %807 = vmatprep.subr.bf16.mxu0 0
    %808 = vmatpush1.bf16.msra.mxu0 0
    %809 = vmatprep.subr.bf16.mxu0 0
    %810 = vmatpush1.bf16.msra.mxu0 0
    %811 = vmatprep.subr.bf16.mxu0 0
    %812 = vmatpush1.bf16.msra.mxu0 0
    %813 = vmatprep.subr.bf16.mxu0 0
    %814 = vmatpush1.bf16.msra.mxu0 0
    %815 = vmatprep.subr.bf16.mxu0 0
    %816 = vmatpush1.bf16.msra.mxu0 0
    %817 = vmatprep.subr.bf16.mxu0 0
    %818 = vmatpush1.bf16.msra.mxu0 0
    %819 = vmatprep.subr.bf16.mxu0 0
    %820 = vmatpush1.bf16.msra.mxu0 0
    %821 = vmatprep.subr.bf16.mxu0 0
    %822 = vmatpush1.bf16.msra.mxu0 0
    %823 = vmatprep.subr.bf16.mxu0 0
    %824 = vmatpush1.bf16.msra.mxu0 0
    %825 = vmatprep.subr.bf16.mxu0 0
    %826 = vmatpush1.bf16.msra.mxu0 0
    %827 = vmatprep.subr.bf16.mxu0 0
    %828 = vmatpush1.bf16.msra.mxu0 0
    %829 = vmatprep.subr.bf16.mxu0 0
    %830 = vmatpush1.bf16.msra.mxu0 0
    %831 = vmatprep.subr.bf16.mxu0 0
    %832 = vmatpush1.bf16.msra.mxu0 0
    %833 = vmatprep.mubr.bf16.mxu0 0
    %834 = vmatmul.mubr.bf16.gmra.mrb[0].mxu0 %v676
    %v835 = vpop.f32.mrb[0].mxu0
    %v836 = vadd.f32 %v795, %v835
    %v837 = vpop.f32.mrb[0].mxu0
    %v838 = vadd.f32 %v797, %v837
    %v839 = vpop.f32.mrb[0].mxu0
    %v840 = vpop.f32.mrb[0].mxu0
    %841 = vdwg.mxu0
    %v842 = vld [vmem:[#allocation7] sm:$0xff]
    %v843 = vld [vmem:[#allocation7 + $0x8] sm:$0xff]
    %v844 = vld [vmem:[#allocation7 + $0x10] sm:$0xff]
    %v845 = vld [vmem:[#allocation7 + $0x18] sm:$0xff]
    %v846 = vld [vmem:[#allocation7 + $0x20] sm:$0xff]
    %v847 = vld [vmem:[#allocation7 + $0x28] sm:$0xff]
    %v848 = vld [vmem:[#allocation7 + $0x30] sm:$0xff]
    %v849 = vld [vmem:[#allocation7 + $0x38] sm:$0xff]
    %v850 = vld [vmem:[#allocation7 + $0x40] sm:$0xff]
    %v851 = vld [vmem:[#allocation7 + $0x48] sm:$0xff]
    %v852 = vld [vmem:[#allocation7 + $0x50] sm:$0xff]
    %v853 = vld [vmem:[#allocation7 + $0x58] sm:$0xff]
    %v854 = vld [vmem:[#allocation7 + $0x60] sm:$0xff]
    %v855 = vld [vmem:[#allocation7 + $0x68] sm:$0xff]
    %v856 = vld [vmem:[#allocation7 + $0x70] sm:$0xff]
    %v857 = vld [vmem:[#allocation7 + $0x78] sm:$0xff]
    %v858 = vld [vmem:[#allocation7 + $0x80] sm:$0xff]
    %v859 = vld [vmem:[#allocation7 + $0x88] sm:$0xff]
    %v860 = vld [vmem:[#allocation7 + $0x90] sm:$0xff]
    %v861 = vld [vmem:[#allocation7 + $0x98] sm:$0xff]
    %v862 = vld [vmem:[#allocation7 + $0xa0] sm:$0xff]
    %v863 = vld [vmem:[#allocation7 + $0xa8] sm:$0xff]
    %v864 = vld [vmem:[#allocation7 + $0xb0] sm:$0xff]
    %v865 = vld [vmem:[#allocation7 + $0xb8] sm:$0xff]
    %v866 = vld [vmem:[#allocation7 + $0xc0] sm:$0xff]
    %v867 = vld [vmem:[#allocation7 + $0xc8] sm:$0xff]
    %v868 = vld [vmem:[#allocation7 + $0xd0] sm:$0xff]
    %v869 = vld [vmem:[#allocation7 + $0xd8] sm:$0xff]
    %v870 = vld [vmem:[#allocation7 + $0xe0] sm:$0xff]
    %v871 = vld [vmem:[#allocation7 + $0xe8] sm:$0xff]
    %v872 = vld [vmem:[#allocation7 + $0xf0] sm:$0xff]
    %v873 = vld [vmem:[#allocation7 + $0xf8] sm:$0xff]
    %v874 = vpack.c.bf16 %v836, %v836
    %v875 = vpack.c.bf16 %v838, %v838
    %v908 = vunpack.c.l.b16 %v842
    %v909 = vunpack.c.h.b16 %v842
    %v910 = vunpack.c.l.b16 %v843
    %v911 = vunpack.c.h.b16 %v843
    %v912 = vunpack.c.l.b16 %v844
    %v913 = vunpack.c.h.b16 %v844
    %v914 = vunpack.c.l.b16 %v845
    %v915 = vunpack.c.h.b16 %v845
    %v916 = vunpack.c.l.b16 %v846
    %v917 = vunpack.c.h.b16 %v846
    %v918 = vunpack.c.l.b16 %v847
    %v919 = vunpack.c.h.b16 %v847
    %v920 = vunpack.c.l.b16 %v848
    %v921 = vunpack.c.h.b16 %v848
    %v922 = vunpack.c.l.b16 %v849
    %v923 = vunpack.c.h.b16 %v849
    %v924 = vunpack.c.l.b16 %v850
    %v925 = vunpack.c.h.b16 %v850
    %v926 = vunpack.c.l.b16 %v851
    %v927 = vunpack.c.h.b16 %v851
    %v928 = vunpack.c.l.b16 %v852
    %v929 = vunpack.c.h.b16 %v852
    %v930 = vunpack.c.l.b16 %v853
    %v931 = vunpack.c.h.b16 %v853
    %v932 = vunpack.c.l.b16 %v854
    %v933 = vunpack.c.h.b16 %v854
    %v934 = vunpack.c.l.b16 %v855
    %v935 = vunpack.c.h.b16 %v855
    %v936 = vunpack.c.l.b16 %v856
    %v937 = vunpack.c.h.b16 %v856
    %v938 = vunpack.c.l.b16 %v857
    %v939 = vunpack.c.h.b16 %v857
    %v940 = vunpack.c.l.b16 %v858
    %v941 = vunpack.c.h.b16 %v858
    %v942 = vunpack.c.l.b16 %v859
    %v943 = vunpack.c.h.b16 %v859
    %v944 = vunpack.c.l.b16 %v860
    %v945 = vunpack.c.h.b16 %v860
    %v946 = vunpack.c.l.b16 %v861
    %v947 = vunpack.c.h.b16 %v861
    %v948 = vunpack.c.l.b16 %v862
    %v949 = vunpack.c.h.b16 %v862
    %v950 = vunpack.c.l.b16 %v863
    %v951 = vunpack.c.h.b16 %v863
    %v952 = vunpack.c.l.b16 %v864
    %v953 = vunpack.c.h.b16 %v864
    %v954 = vunpack.c.l.b16 %v865
    %v955 = vunpack.c.h.b16 %v865
    %v956 = vunpack.c.l.b16 %v866
    %v957 = vunpack.c.h.b16 %v866
    %v958 = vunpack.c.l.b16 %v867
    %v959 = vunpack.c.h.b16 %v867
    %v960 = vunpack.c.l.b16 %v868
    %v961 = vunpack.c.h.b16 %v868
    %v962 = vunpack.c.l.b16 %v869
    %v963 = vunpack.c.h.b16 %v869
    %v964 = vunpack.c.l.b16 %v870
    %v965 = vunpack.c.h.b16 %v870
    %v966 = vunpack.c.l.b16 %v871
    %v967 = vunpack.c.h.b16 %v871
    %v968 = vunpack.c.l.b16 %v872
    %v969 = vunpack.c.h.b16 %v872
    %v970 = vunpack.c.l.b16 %v873
    %v971 = vunpack.c.h.b16 %v873
    %v972 = vpack.c.b16 %v910, %v908
    %v973 = vpack.c.b16 %v911, %v909
    %v974 = vpack.c.b16 %v914, %v912
    %v975 = vpack.c.b16 %v915, %v913
    %v976 = vpack.c.b16 %v918, %v916
    %v977 = vpack.c.b16 %v919, %v917
    %v978 = vpack.c.b16 %v922, %v920
    %v979 = vpack.c.b16 %v923, %v921
    %v980 = vpack.c.b16 %v926, %v924
    %v981 = vpack.c.b16 %v927, %v925
    %v982 = vpack.c.b16 %v930, %v928
    %v983 = vpack.c.b16 %v931, %v929
    %v984 = vpack.c.b16 %v934, %v932
    %v985 = vpack.c.b16 %v935, %v933
    %v986 = vpack.c.b16 %v938, %v936
    %v987 = vpack.c.b16 %v939, %v937
    %v988 = vpack.c.b16 %v942, %v940
    %v989 = vpack.c.b16 %v943, %v941
    %v990 = vpack.c.b16 %v946, %v944
    %v991 = vpack.c.b16 %v947, %v945
    %v992 = vpack.c.b16 %v950, %v948
    %v993 = vpack.c.b16 %v951, %v949
    %v994 = vpack.c.b16 %v954, %v952
    %v995 = vpack.c.b16 %v955, %v953
    %v996 = vpack.c.b16 %v958, %v956
    %v997 = vpack.c.b16 %v959, %v957
    %v998 = vpack.c.b16 %v962, %v960
    %v999 = vpack.c.b16 %v963, %v961
    %v1000 = vpack.c.b16 %v966, %v964
    %v1001 = vpack.c.b16 %v967, %v965
    %v1002 = vpack.c.b16 %v970, %v968
    %v1003 = vpack.c.b16 %v971, %v969
    %1036 = vmatprep.subr.bf16.mxu0 %v973
    %1037 = vmatpush1.bf16.msra.mxu0 %v972
    %1038 = vmatprep.subr.bf16.mxu0 %v975
    %1039 = vmatpush1.bf16.msra.mxu0 %v974
    %1040 = vmatprep.subr.bf16.mxu0 %v977
    %1041 = vmatpush1.bf16.msra.mxu0 %v976
    %1042 = vmatprep.subr.bf16.mxu0 %v979
    %1043 = vmatpush1.bf16.msra.mxu0 %v978
    %1044 = vmatprep.subr.bf16.mxu0 %v981
    %1045 = vmatpush1.bf16.msra.mxu0 %v980
    %1046 = vmatprep.subr.bf16.mxu0 %v983
    %1047 = vmatpush1.bf16.msra.mxu0 %v982
    %1048 = vmatprep.subr.bf16.mxu0 %v985
    %1049 = vmatpush1.bf16.msra.mxu0 %v984
    %1050 = vmatprep.subr.bf16.mxu0 %v987
    %1051 = vmatpush1.bf16.msra.mxu0 %v986
    %1052 = vmatprep.subr.bf16.mxu0 %v989
    %1053 = vmatpush1.bf16.msra.mxu0 %v988
    %1054 = vmatprep.subr.bf16.mxu0 %v991
    %1055 = vmatpush1.bf16.msra.mxu0 %v990
    %1056 = vmatprep.subr.bf16.mxu0 %v993
    %1057 = vmatpush1.bf16.msra.mxu0 %v992
    %1058 = vmatprep.subr.bf16.mxu0 %v995
    %1059 = vmatpush1.bf16.msra.mxu0 %v994
    %1060 = vmatprep.subr.bf16.mxu0 %v997
    %1061 = vmatpush1.bf16.msra.mxu0 %v996
    %1062 = vmatprep.subr.bf16.mxu0 %v999
    %1063 = vmatpush1.bf16.msra.mxu0 %v998
    %1064 = vmatprep.subr.bf16.mxu0 %v1001
    %1065 = vmatpush1.bf16.msra.mxu0 %v1000
    %1066 = vmatprep.subr.bf16.mxu0 %v1003
    %1067 = vmatpush1.bf16.msra.mxu0 %v1002
    %1068 = vmatprep.mubr.bf16.mxu0 %v875
    %1069 = vmatmul.mubr.bf16.gmra.mrb[0].mxu0 %v874
    %v1070 = vpop.f32.mrb[0].mxu0
    %v1071 = vadd.f32 0.0, %v1070
    %v1072 = vpop.f32.mrb[0].mxu0
    %v1073 = vadd.f32 0.0, %v1072
    %v1074 = vpop.f32.mrb[0].mxu0
    %v1075 = vpop.f32.mrb[0].mxu0
    %1076 = vdwg.mxu0
    %v1077 = vmul.f32 %v1071, %v836
    %v1078 = vmul.f32 %v1073, %v838
    %v1079 = vadd.f32 %v1077, %v836
    %v1080 = vadd.f32 %v1078, %v838
    %v1081 = vpack.c.bf16 %v1079, %v1079
    %v1082 = vpack.c.bf16 %v1080, %v1080
    %1083 = vmatprep.subr.bf16.mxu0 %v973
    %1084 = vmatpush1.bf16.msra.mxu0 %v972
    %1085 = vmatprep.subr.bf16.mxu0 %v975
    %1086 = vmatpush1.bf16.msra.mxu0 %v974
    %1087 = vmatprep.subr.bf16.mxu0 %v977
    %1088 = vmatpush1.bf16.msra.mxu0 %v976
    %1089 = vmatprep.subr.bf16.mxu0 %v979
    %1090 = vmatpush1.bf16.msra.mxu0 %v978
    %1091 = vmatprep.subr.bf16.mxu0 %v981
    %1092 = vmatpush1.bf16.msra.mxu0 %v980
    %1093 = vmatprep.subr.bf16.mxu0 %v983
    %1094 = vmatpush1.bf16.msra.mxu0 %v982
    %1095 = vmatprep.subr.bf16.mxu0 %v985
    %1096 = vmatpush1.bf16.msra.mxu0 %v984
    %1097 = vmatprep.subr.bf16.mxu0 %v987
    %1098 = vmatpush1.bf16.msra.mxu0 %v986
    %1099 = vmatprep.subr.bf16.mxu0 %v989
    %1100 = vmatpush1.bf16.msra.mxu0 %v988
    %1101 = vmatprep.subr.bf16.mxu0 %v991
    %1102 = vmatpush1.bf16.msra.mxu0 %v990
    %1103 = vmatprep.subr.bf16.mxu0 %v993
    %1104 = vmatpush1.bf16.msra.mxu0 %v992
    %1105 = vmatprep.subr.bf16.mxu0 %v995
    %1106 = vmatpush1.bf16.msra.mxu0 %v994
    %1107 = vmatprep.subr.bf16.mxu0 %v997
    %1108 = vmatpush1.bf16.msra.mxu0 %v996
    %1109 = vmatprep.subr.bf16.mxu0 %v999
    %1110 = vmatpush1.bf16.msra.mxu0 %v998
    %1111 = vmatprep.subr.bf16.mxu0 %v1001
    %1112 = vmatpush1.bf16.msra.mxu0 %v1000
    %1113 = vmatprep.subr.bf16.mxu0 %v1003
    %1114 = vmatpush1.bf16.msra.mxu0 %v1002
    %1115 = vmatprep.mubr.bf16.mxu0 %v1082
    %1116 = vmatmul.mubr.bf16.gmra.mrb[0].mxu0 %v1081
    %v1117 = vpop.f32.mrb[0].mxu0
    %v1118 = vadd.f32 0.0, %v1117
    %v1119 = vpop.f32.mrb[0].mxu0
    %v1120 = vadd.f32 0.0, %v1119
    %v1121 = vpop.f32.mrb[0].mxu0
    %v1122 = vpop.f32.mrb[0].mxu0
    %1123 = vdwg.mxu0
    %v1124 = vmul.f32 %v1118, %v1079
    %v1125 = vmul.f32 %v1120, %v1080
    %v1126 = vadd.f32 %v1124, %v836
    %v1127 = vadd.f32 %v1125, %v838
    %v1128 = vpack.c.bf16 %v1126, %v1126
    %v1129 = vpack.c.bf16 %v1127, %v1127
    %1130 = vmatprep.subr.bf16.mxu0 %v973
    %1131 = vmatpush1.bf16.msra.mxu0 %v972
    %1132 = vmatprep.subr.bf16.mxu0 %v975
    %1133 = vmatpush1.bf16.msra.mxu0 %v974
    %1134 = vmatprep.subr.bf16.mxu0 %v977
    %1135 = vmatpush1.bf16.msra.mxu0 %v976
    %1136 = vmatprep.subr.bf16.mxu0 %v979
    %1137 = vmatpush1.bf16.msra.mxu0 %v978
    %1138 = vmatprep.subr.bf16.mxu0 %v981
    %1139 = vmatpush1.bf16.msra.mxu0 %v980
    %1140 = vmatprep.subr.bf16.mxu0 %v983
    %1141 = vmatpush1.bf16.msra.mxu0 %v982
    %1142 = vmatprep.subr.bf16.mxu0 %v985
    %1143 = vmatpush1.bf16.msra.mxu0 %v984
    %1144 = vmatprep.subr.bf16.mxu0 %v987
    %1145 = vmatpush1.bf16.msra.mxu0 %v986
    %1146 = vmatprep.subr.bf16.mxu0 %v989
    %1147 = vmatpush1.bf16.msra.mxu0 %v988
    %1148 = vmatprep.subr.bf16.mxu0 %v991
    %1149 = vmatpush1.bf16.msra.mxu0 %v990
    %1150 = vmatprep.subr.bf16.mxu0 %v993
    %1151 = vmatpush1.bf16.msra.mxu0 %v992
    %1152 = vmatprep.subr.bf16.mxu0 %v995
    %1153 = vmatpush1.bf16.msra.mxu0 %v994
    %1154 = vmatprep.subr.bf16.mxu0 %v997
    %1155 = vmatpush1.bf16.msra.mxu0 %v996
    %1156 = vmatprep.subr.bf16.mxu0 %v999
    %1157 = vmatpush1.bf16.msra.mxu0 %v998
    %1158 = vmatprep.subr.bf16.mxu0 %v1001
    %1159 = vmatpush1.bf16.msra.mxu0 %v1000
    %1160 = vmatprep.subr.bf16.mxu0 %v1003
    %1161 = vmatpush1.bf16.msra.mxu0 %v1002
    %1162 = vmatprep.mubr.bf16.mxu0 %v1129
    %1163 = vmatmul.mubr.bf16.gmra.mrb[0].mxu0 %v1128
    %v1164 = vpop.f32.mrb[0].mxu0
    %v1165 = vadd.f32 0.0, %v1164
    %v1166 = vpop.f32.mrb[0].mxu0
    %v1167 = vadd.f32 0.0, %v1166
    %v1168 = vpop.f32.mrb[0].mxu0
    %v1169 = vpop.f32.mrb[0].mxu0
    %1170 = vdwg.mxu0
    %v1171 = vmul.f32 %v1165, %v1126
    %v1172 = vmul.f32 %v1167, %v1127
    %v1173 = vadd.f32 %v1171, %v836
    %v1174 = vadd.f32 %v1172, %v838
    %v1175 = vpack.c.bf16 %v1173, %v1173
    %v1176 = vpack.c.bf16 %v1174, %v1174
    %1177 = vmatprep.subr.bf16.mxu0 %v973
    %1178 = vmatpush1.bf16.msra.mxu0 %v972
    %1179 = vmatprep.subr.bf16.mxu0 %v975
    %1180 = vmatpush1.bf16.msra.mxu0 %v974
    %1181 = vmatprep.subr.bf16.mxu0 %v977
    %1182 = vmatpush1.bf16.msra.mxu0 %v976
    %1183 = vmatprep.subr.bf16.mxu0 %v979
    %1184 = vmatpush1.bf16.msra.mxu0 %v978
    %1185 = vmatprep.subr.bf16.mxu0 %v981
    %1186 = vmatpush1.bf16.msra.mxu0 %v980
    %1187 = vmatprep.subr.bf16.mxu0 %v983
    %1188 = vmatpush1.bf16.msra.mxu0 %v982
    %1189 = vmatprep.subr.bf16.mxu0 %v985
    %1190 = vmatpush1.bf16.msra.mxu0 %v984
    %1191 = vmatprep.subr.bf16.mxu0 %v987
    %1192 = vmatpush1.bf16.msra.mxu0 %v986
    %1193 = vmatprep.subr.bf16.mxu0 %v989
    %1194 = vmatpush1.bf16.msra.mxu0 %v988
    %1195 = vmatprep.subr.bf16.mxu0 %v991
    %1196 = vmatpush1.bf16.msra.mxu0 %v990
    %1197 = vmatprep.subr.bf16.mxu0 %v993
    %1198 = vmatpush1.bf16.msra.mxu0 %v992
    %1199 = vmatprep.subr.bf16.mxu0 %v995
    %1200 = vmatpush1.bf16.msra.mxu0 %v994
    %1201 = vmatprep.subr.bf16.mxu0 %v997
    %1202 = vmatpush1.bf16.msra.mxu0 %v996
    %1203 = vmatprep.subr.bf16.mxu0 %v999
    %1204 = vmatpush1.bf16.msra.mxu0 %v998
    %1205 = vmatprep.subr.bf16.mxu0 %v1001
    %1206 = vmatpush1.bf16.msra.mxu0 %v1000
    %1207 = vmatprep.subr.bf16.mxu0 %v1003
    %1208 = vmatpush1.bf16.msra.mxu0 %v1002
    %1209 = vmatprep.mubr.bf16.mxu0 %v1176
    %1210 = vmatmul.mubr.bf16.gmra.mrb[0].mxu0 %v1175
    %v1211 = vpop.f32.mrb[0].mxu0
    %v1212 = vadd.f32 0.0, %v1211
    %v1213 = vpop.f32.mrb[0].mxu0
    %v1214 = vadd.f32 0.0, %v1213
    %v1215 = vpop.f32.mrb[0].mxu0
    %v1216 = vpop.f32.mrb[0].mxu0
    %1217 = vdwg.mxu0
    %v1218 = vmul.f32 %v1212, %v1173
    %v1219 = vmul.f32 %v1214, %v1174
    %v1220 = vadd.f32 %v1218, %v836
    %v1221 = vadd.f32 %v1219, %v838
    %v1222 = vpack.c.bf16 %v1220, %v1220
    %v1223 = vpack.c.bf16 %v1221, %v1221
    %v1224 = vld [vmem:[#allocation8] sm:$0xf]
    %v1225 = vld [vmem:[#allocation8 + $0x4] sm:$0xf]
    %v1226 = vld [vmem:[#allocation8 + $0x8] sm:$0xf]
    %v1227 = vld [vmem:[#allocation8 + $0xc] sm:$0xf]
    %v1228 = vld [vmem:[#allocation8 + $0x10] sm:$0xf]
    %v1229 = vld [vmem:[#allocation8 + $0x14] sm:$0xf]
    %v1230 = vld [vmem:[#allocation8 + $0x18] sm:$0xf]
    %v1231 = vld [vmem:[#allocation8 + $0x1c] sm:$0xf]
    %v1232 = vld [vmem:[#allocation8 + $0x20] sm:$0xf]
    %v1233 = vld [vmem:[#allocation8 + $0x24] sm:$0xf]
    %v1234 = vld [vmem:[#allocation8 + $0x28] sm:$0xf]
    %v1235 = vld [vmem:[#allocation8 + $0x2c] sm:$0xf]
    %v1236 = vld [vmem:[#allocation8 + $0x30] sm:$0xf]
    %v1237 = vld [vmem:[#allocation8 + $0x34] sm:$0xf]
    %v1238 = vld [vmem:[#allocation8 + $0x38] sm:$0xf]
    %v1239 = vld [vmem:[#allocation8 + $0x3c] sm:$0xf]
    %v1240 = vld [vmem:[#allocation8 + $0x40] sm:$0xf]
    %v1241 = vld [vmem:[#allocation8 + $0x44] sm:$0xf]
    %v1242 = vld [vmem:[#allocation8 + $0x48] sm:$0xf]
    %v1243 = vld [vmem:[#allocation8 + $0x4c] sm:$0xf]
    %v1244 = vld [vmem:[#allocation8 + $0x50] sm:$0xf]
    %v1245 = vld [vmem:[#allocation8 + $0x54] sm:$0xf]
    %v1246 = vld [vmem:[#allocation8 + $0x58] sm:$0xf]
    %v1247 = vld [vmem:[#allocation8 + $0x5c] sm:$0xf]
    %v1248 = vld [vmem:[#allocation8 + $0x60] sm:$0xf]
    %v1249 = vld [vmem:[#allocation8 + $0x64] sm:$0xf]
    %v1250 = vld [vmem:[#allocation8 + $0x68] sm:$0xf]
    %v1251 = vld [vmem:[#allocation8 + $0x6c] sm:$0xf]
    %v1252 = vld [vmem:[#allocation8 + $0x70] sm:$0xf]
    %v1253 = vld [vmem:[#allocation8 + $0x74] sm:$0xf]
    %v1254 = vld [vmem:[#allocation8 + $0x78] sm:$0xf]
    %v1255 = vld [vmem:[#allocation8 + $0x7c] sm:$0xf]
    %v1288 = vunpack.c.l.b16 %v1224
    %v1289 = vunpack.c.l.b16 %v1225
    %v1290 = vunpack.c.l.b16 %v1226
    %v1291 = vunpack.c.l.b16 %v1227
    %v1292 = vunpack.c.l.b16 %v1228
    %v1293 = vunpack.c.l.b16 %v1229
    %v1294 = vunpack.c.l.b16 %v1230
    %v1295 = vunpack.c.l.b16 %v1231
    %v1296 = vunpack.c.l.b16 %v1232
    %v1297 = vunpack.c.l.b16 %v1233
    %v1298 = vunpack.c.l.b16 %v1234
    %v1299 = vunpack.c.l.b16 %v1235
    %v1300 = vunpack.c.l.b16 %v1236
    %v1301 = vunpack.c.l.b16 %v1237
    %v1302 = vunpack.c.l.b16 %v1238
    %v1303 = vunpack.c.l.b16 %v1239
    %v1304 = vunpack.c.l.b16 %v1240
    %v1305 = vunpack.c.l.b16 %v1241
    %v1306 = vunpack.c.l.b16 %v1242
    %v1307 = vunpack.c.l.b16 %v1243
    %v1308 = vunpack.c.l.b16 %v1244
    %v1309 = vunpack.c.l.b16 %v1245
    %v1310 = vunpack.c.l.b16 %v1246
    %v1311 = vunpack.c.l.b16 %v1247
    %v1312 = vunpack.c.l.b16 %v1248
    %v1313 = vunpack.c.l.b16 %v1249
    %v1314 = vunpack.c.l.b16 %v1250
    %v1315 = vunpack.c.l.b16 %v1251
    %v1316 = vunpack.c.l.b16 %v1252
    %v1317 = vunpack.c.l.b16 %v1253
    %v1318 = vunpack.c.l.b16 %v1254
    %v1319 = vunpack.c.l.b16 %v1255
    %v1320 = vpack.c.b16 %v1289, %v1288
    %v1321 = vpack.c.b16 %v1291, %v1290
    %v1322 = vpack.c.b16 %v1293, %v1292
    %v1323 = vpack.c.b16 %v1295, %v1294
    %v1324 = vpack.c.b16 %v1297, %v1296
    %v1325 = vpack.c.b16 %v1299, %v1298
    %v1326 = vpack.c.b16 %v1301, %v1300
    %v1327 = vpack.c.b16 %v1303, %v1302
    %v1328 = vpack.c.b16 %v1305, %v1304
    %v1329 = vpack.c.b16 %v1307, %v1306
    %v1330 = vpack.c.b16 %v1309, %v1308
    %v1331 = vpack.c.b16 %v1311, %v1310
    %v1332 = vpack.c.b16 %v1313, %v1312
    %v1333 = vpack.c.b16 %v1315, %v1314
    %v1334 = vpack.c.b16 %v1317, %v1316
    %v1335 = vpack.c.b16 %v1319, %v1318
    %1352 = vmatprep.subr.bf16.mxu0 0
    %1353 = vmatpush1.bf16.msra.mxu0 %v1320
    %1354 = vmatprep.subr.bf16.mxu0 0
    %1355 = vmatpush1.bf16.msra.mxu0 %v1321
    %1356 = vmatprep.subr.bf16.mxu0 0
    %1357 = vmatpush1.bf16.msra.mxu0 %v1322
    %1358 = vmatprep.subr.bf16.mxu0 0
    %1359 = vmatpush1.bf16.msra.mxu0 %v1323
    %1360 = vmatprep.subr.bf16.mxu0 0
    %1361 = vmatpush1.bf16.msra.mxu0 %v1324
    %1362 = vmatprep.subr.bf16.mxu0 0
    %1363 = vmatpush1.bf16.msra.mxu0 %v1325
    %1364 = vmatprep.subr.bf16.mxu0 0
    %1365 = vmatpush1.bf16.msra.mxu0 %v1326
    %1366 = vmatprep.subr.bf16.mxu0 0
    %1367 = vmatpush1.bf16.msra.mxu0 %v1327
    %1368 = vmatprep.subr.bf16.mxu0 0
    %1369 = vmatpush1.bf16.msra.mxu0 %v1328
    %1370 = vmatprep.subr.bf16.mxu0 0
    %1371 = vmatpush1.bf16.msra.mxu0 %v1329
    %1372 = vmatprep.subr.bf16.mxu0 0
    %1373 = vmatpush1.bf16.msra.mxu0 %v1330
    %1374 = vmatprep.subr.bf16.mxu0 0
    %1375 = vmatpush1.bf16.msra.mxu0 %v1331
    %1376 = vmatprep.subr.bf16.mxu0 0
    %1377 = vmatpush1.bf16.msra.mxu0 %v1332
    %1378 = vmatprep.subr.bf16.mxu0 0
    %1379 = vmatpush1.bf16.msra.mxu0 %v1333
    %1380 = vmatprep.subr.bf16.mxu0 0
    %1381 = vmatpush1.bf16.msra.mxu0 %v1334
    %1382 = vmatprep.subr.bf16.mxu0 0
    %1383 = vmatpush1.bf16.msra.mxu0 %v1335
    %1384 = vmatprep.mubr.bf16.mxu0 %v1223
    %1385 = vmatmul.mubr.bf16.gmra.mrb[0].mxu0 %v1222
    %v1386 = vpop.f32.mrb[0].mxu0
    %v1387 = vadd.f32 0.0, %v1386
    %v1388 = vpop.f32.mrb[0].mxu0
    %v1389 = vpop.f32.mrb[0].mxu0
    %v1390 = vpop.f32.mrb[0].mxu0
    %1391 = vdwg.mxu0
    %1392 = vst [vmem:[#allocation10] sm:$0xff] %v1387
    // Predicated region
    $region34: #{denseddnet_forward.1} parent=1 // pred_check
      _
    $region35: #{denseddnet_forward.1} parent=1 // pred_check_branch
      %1394 = sbr.rel (0) target = $region37
    $region36: #{denseddnet_forward.1} parent=1 // pred_region
      %s1396 = ssub.s32 128, 128
      %1397 = vsyncadd [#allocation4], %s1396
      %s1399 = sshll.u32 [#allocation10], 4
      %s1400 = int_to_ptr.vmem [resolvable:$true] %s1399
      %1402 = dma.vmem_to_hbm [thread:$0]  %s1400, 128, %s4, [#allocation4]
    $region37: #{denseddnet_forward.1} parent=1 // pred_fallthru
      _
    // Predicated region
    $region38: #{denseddnet_forward.1} parent=1 // pred_check
      _
    $region39: #{denseddnet_forward.1} parent=1 // pred_check_branch
      %1404 = sbr.rel (0) target = $region41
    $region40: #{denseddnet_forward.1} parent=1 // pred_region
      %1405 = dma.done [#allocation4], 128
    $region41: #{denseddnet_forward.1} parent=1 // pred_fallthru
      _
    %1406 = vsyncpa [#allocation3], 1
    %1407 = vsyncpa [#allocation6], 1
    %1408 = vsyncpa [#allocation9], 1
    %1409 = vsyncpa [#allocation4], 1

</llo_original>
